<compile_context>
chip_gen: v7x
topology: tpu7x:2x2x1
jax: 0.10.0
libtpu: 0.0.40
codegen_flags: <defaults>
</compile_context>

<pallas_src>
import jax
import jax.numpy as jnp
from jax.experimental import pallas as pl
from jax.experimental.pallas import tpu as pltpu


# ---------------------------------------------------------------------------
# Parameter preparation (hoisted out of the per-call forward pass)
# ---------------------------------------------------------------------------
def prepare_head_params(weight, bias, *, individual, compute_dtype=None):
    """Transpose PyTorch-layout Linear params once.

    weight: [T, nf]            -> [nf, T]            (shared)
            [n_vars, T, nf]    -> [n_vars, nf, T]    (individual)
    bias  : [T] -> [1, T]   /   [n_vars, T] -> [n_vars, 1, T]

    If compute_dtype (e.g. jnp.bfloat16) is given, the weight is stored in that
    dtype; the kernel then casts x tiles to it, running the MXU in low precision
    with f32 accumulation.  Leave None for exact f32 semantics.
    """
    if individual:
        w_t = jnp.swapaxes(weight, 1, 2)          # [n_vars, nf, T]
        b_t = bias[:, None, :]                    # [n_vars, 1, T]
    else:
        w_t = jnp.swapaxes(weight, 0, 1)          # [nf, T]
        b_t = bias[None, :]                       # [1, T]
    if compute_dtype is not None:
        w_t = w_t.astype(compute_dtype)
    return w_t, b_t


# ---------------------------------------------------------------------------
# Kernels
# ---------------------------------------------------------------------------
def _shared_head_kernel(x_ref, w_ref, b_ref, o_ref):
    # x_ref: (tm, nf)   w_ref: (nf, T) resident   b_ref: (1, T)   o_ref: (tm, T)
    x = x_ref[...].astype(w_ref.dtype)            # bf16 MXU if weight is bf16
    acc = jnp.dot(x, w_ref[...], preferred_element_type=jnp.float32)
    o_ref[...] = (acc + b_ref[...].astype(jnp.float32)).astype(o_ref.dtype)


def _individual_head_kernel(x_hbm, w_ref, b_ref, o_hbm, xbuf, obuf, sems):
    # x_hbm: (B, n_vars, nf) in HBM      o_hbm: (B, n_vars, T) in HBM
    # w_ref: (1, nf, T)                  b_ref: (1, 1, T)
    # xbuf : (B, 1, nf) VMEM scratch     obuf : (B, 1, T) VMEM scratch
    v = pl.program_id(0)

    cp_in = pltpu.make_async_copy(x_hbm.at[:, pl.ds(v, 1), :], xbuf, sems.at[0])
    cp_in.start()
    cp_in.wait()

    x = xbuf[:, 0, :].astype(w_ref.dtype)         # (B, nf)
    acc = jnp.dot(x, w_ref[0], preferred_element_type=jnp.float32)   # (B, T)
    obuf[:, 0, :] = (acc + b_ref[0].astype(jnp.float32)).astype(obuf.dtype)

    cp_out = pltpu.make_async_copy(obuf, o_hbm.at[:, pl.ds(v, 1), :], sems.at[1])
    cp_out.start()
    cp_out.wait()


# ---------------------------------------------------------------------------
# Forward wrapper
# ---------------------------------------------------------------------------
def flatten_head_forward(x, w_t, b_t, *, individual, m_tile=256,
                         vmem_budget=44 * 1024 * 1024):
    """
    x   : [B, n_vars, d_model, patch_num]
    w_t : [nf, T] (shared) or [n_vars, nf, T] (individual)   -- prepared
    b_t : [1, T]            or [n_vars, 1, T]                -- prepared
    returns [B, n_vars, T]
    """
    B, n_vars, d_model, patch_num = x.shape
    nf = d_model * patch_num

    if not individual:
        T = w_t.shape[1]
        M = B * n_vars
        x2 = x.reshape(M, nf)                     # contiguous -> free

        xb = jnp.dtype(x.dtype).itemsize
        wb = jnp.dtype(w_t.dtype).itemsize

        # MXU-aligned M tile, shrunk to fit a v7x-safe VMEM budget
        # (resident weight counted twice to be conservative about buffering).
        def _need(t):
            return (2 * nf * T * wb          # resident weight
                    + 2 * t * nf * xb        # double-buffered x tile
                    + 2 * t * T * xb         # double-buffered out tile
                    + 2 * T * wb)            # bias
        if M <= m_tile:
            tm = M                            # full dim -> always a legal block
        else:
            tm = m_tile
            while tm > 8 and _need(tm) > vmem_budget:
                tm //= 2
            tm = max(tm, 8)
        grid_m = pl.cdiv(M, tm)               # ragged last tile handled by Pallas
        vmem_limit = int(min(48 * 1024 * 1024,
                             max(32 * 1024 * 1024, 2 * _need(tm))))

        out = pl.pallas_call(
            _shared_head_kernel,
            out_shape=jax.ShapeDtypeStruct((M, T), x.dtype),
            grid=(grid_m,),
            in_specs=[
                pl.BlockSpec((tm, nf), lambda i: (i, 0)),
                pl.BlockSpec((nf, T), lambda i: (0, 0)),   # resident weight
                pl.BlockSpec((1, T), lambda i: (0, 0)),    # resident bias
            ],
            out_specs=pl.BlockSpec((tm, T), lambda i: (i, 0)),
            compiler_params=pltpu.CompilerParams(
                dimension_semantics=("parallel",),
                vmem_limit_bytes=vmem_limit),
        )(x2, w_t, b_t)
        return out.reshape(B, n_vars, T)

    # ---- individual path: per-variable weights, no HBM transposes ----------
    T = w_t.shape[2]
    x3 = x.reshape(B, n_vars, nf)                 # contiguous -> free, stays in HBM

    out = pl.pallas_call(
        _individual_head_kernel,
        out_shape=jax.ShapeDtypeStruct((B, n_vars, T), x.dtype),
        grid=(n_vars,),
        in_specs=[
            pl.BlockSpec(memory_space=pl.ANY),              # x: raw HBM, DMA'd per-var
            pl.BlockSpec((1, nf, T), lambda v: (v, 0, 0)),  # per-var weight
            pl.BlockSpec((1, 1, T), lambda v: (v, 0, 0)),   # per-var bias
        ],
        out_specs=pl.BlockSpec(memory_space=pl.ANY),        # written via DMA
        scratch_shapes=[
            pltpu.VMEM((B, 1, nf), x.dtype),
            pltpu.VMEM((B, 1, T), x.dtype),
            pltpu.SemaphoreType.DMA((2,)),
        ],
        compiler_params=pltpu.CompilerParams(
            dimension_semantics=("parallel",)),
    )(x3, w_t, b_t)
    return out


# ---------------------------------------------------------------------------
# Pure-JAX reference (high precision matmul so the f32 path comparison is fair)
# ---------------------------------------------------------------------------
def _reference(x, weight, bias, *, individual):
    B, n_vars, d_model, patch_num = x.shape
    xf = x.reshape(B, n_vars, d_model * patch_num)
    if individual:
        y = jnp.einsum("bvn,vtn->bvt", xf, weight,
                       precision=jax.lax.Precision.HIGHEST)
        return y + bias[None, :, :]
    y = jnp.einsum("bvn,tn->bvt", xf, weight,
                   precision=jax.lax.Precision.HIGHEST)
    return y + bias[None, None, :]


if __name__ == "__main__":
    # Small, forward-implied shapes.
    B, n_vars, d_model, patch_num = 2, 4, 16, 8
    nf = d_model * patch_num          # 128
    target_window = 24

    key = jax.random.PRNGKey(0)
    k_x, k_w, k_b, k_wi, k_bi = jax.random.split(key, 5)

    x = jax.random.normal(k_x, (B, n_vars, d_model, patch_num), dtype=jnp.float32)

    bound = 1.0 / float(nf) ** 0.5
    w_shared = jax.random.uniform(k_w, (target_window, nf), minval=-bound, maxval=bound)
    b_shared = jax.random.uniform(k_b, (target_window,), minval=-bound, maxval=bound)
    w_ind = jax.random.uniform(k_wi, (n_vars, target_window, nf), minval=-bound, maxval=bound)
    b_ind = jax.random.uniform(k_bi, (n_vars, target_window), minval=-bound, maxval=bound)

    fwd = jax.jit(flatten_head_forward, static_argnames=("individual",))

    # --- individual = False (shared weight, resident in VMEM) ----------------
    w_t, b_t = prepare_head_params(w_shared, b_shared, individual=False)
    out_shared = fwd(x, w_t, b_t, individual=False)
    jax.block_until_ready(out_shared)
    ref_shared = _reference(x, w_shared, b_shared, individual=False)
    assert out_shared.shape == (B, n_vars, target_window)
    assert jnp.allclose(out_shared, ref_shared, atol=5e-3, rtol=1e-3), (
        float(jnp.max(jnp.abs(out_shared - ref_shared))))

    # --- shared path, bf16 MXU (weights prepared in bf16) --------------------
    w_bt, b_bt = prepare_head_params(w_shared, b_shared, individual=False,
                                     compute_dtype=jnp.bfloat16)
    out_bf16 = fwd(x, w_bt, b_bt, individual=False)
    jax.block_until_ready(out_bf16)
    assert out_bf16.shape == (B, n_vars, target_window)
    assert jnp.allclose(out_bf16, ref_shared, atol=5e-2, rtol=5e-2), (
        float(jnp.max(jnp.abs(out_bf16 - ref_shared))))

    # --- individual = True (per-variable weights, manual-DMA path) -----------
    wi_t, bi_t = prepare_head_params(w_ind, b_ind, individual=True)
    out_ind = fwd(x, wi_t, bi_t, individual=True)
    jax.block_until_ready(out_ind)
    ref_ind = _reference(x, w_ind, b_ind, individual=True)
    assert out_ind.shape == (B, n_vars, target_window)
    assert jnp.allclose(out_ind, ref_ind, atol=5e-3, rtol=1e-3), (
        float(jnp.max(jnp.abs(out_ind - ref_ind))))

    print("KERNEL_OK")
</pallas_src>

<mosaic_0001>
module attributes {stable_mosaic.version = 11 : i64} {
  func.func @_shared_head_kernel(%arg0: i32, %arg1: memref<8x128xf32, #tpu.memory_space<vmem>>, %arg2: memref<128x24xf32, #tpu.memory_space<vmem>>, %arg3: memref<1x24xf32, #tpu.memory_space<vmem>>, %arg4: memref<8x24xf32, #tpu.memory_space<vmem>>) attributes {dimension_semantics = [#tpu.dimension_semantics<parallel>], iteration_bounds = array<i64: 1>, scalar_prefetch = 0 : i64, scratch_operands = 0 : i64, tpu.core_type = #tpu.core_type<tc>, window_params = [{transform_indices = @transform_0, window_bounds = array<i64: 8, 128>}, {pipeline_mode = #tpu.pipeline_mode<synchronous>, transform_indices = @transform_1, window_bounds = array<i64: 128, 24>}, {pipeline_mode = #tpu.pipeline_mode<synchronous>, transform_indices = @transform_2, window_bounds = array<i64: 1, 24>}, {transform_indices = @transform_3, window_bounds = array<i64: 8, 24>}]} {
    %c0 = arith.constant 0 : index
    %c0_0 = arith.constant 0 : index
    %0 = vector.load %arg1[%c0, %c0_0] : memref<8x128xf32, #tpu.memory_space<vmem>>, vector<8x128xf32>
    %c0_1 = arith.constant 0 : index
    %c0_2 = arith.constant 0 : index
    %1 = vector.load %arg2[%c0_1, %c0_2] : memref<128x24xf32, #tpu.memory_space<vmem>>, vector<128x24xf32>
    %cst = arith.constant dense<0.000000e+00> : vector<8x24xf32>
    %2 = tpu.matmul %0, %1, %cst {dimension_numbers = #tpu.dot_dimension_numbers<[1], [0], [0], [1], [0, 0, 1, 1], [], []>} : vector<8x128xf32>, vector<128x24xf32>, vector<8x24xf32> -> vector<8x24xf32>
    %c0_3 = arith.constant 0 : index
    %c0_4 = arith.constant 0 : index
    %3 = vector.load %arg3[%c0_3, %c0_4] : memref<1x24xf32, #tpu.memory_space<vmem>>, vector<1x24xf32>
    %4 = vector.broadcast %3 : vector<1x24xf32> to vector<8x24xf32>
    %5 = arith.addf %2, %4 : vector<8x24xf32>
    %c0_5 = arith.constant 0 : index
    %c0_6 = arith.constant 0 : index
    %6 = vector.load %arg4[%c0_5, %c0_6] : memref<8x24xf32, #tpu.memory_space<vmem>>, vector<8x24xf32>
    tpu.vector_store %arg4[%c0_5, %c0_6], %5 {strides = array<i32>} : memref<8x24xf32, #tpu.memory_space<vmem>>, vector<8x24xf32>,
    return
  }
  func.func @transform_0(%arg0: i32) -> (i32, i32) {
    %c0_i32 = arith.constant 0 : i32
    %c0_i32_0 = arith.constant 0 : i32
    return %arg0, %c0_i32 : i32, i32
  }
  func.func @transform_1(%arg0: i32) -> (i32, i32) {
    %c0_i32 = arith.constant 0 : i32
    %c0_i32_0 = arith.constant 0 : i32
    %c0_i32_1 = arith.constant 0 : i32
    return %c0_i32, %c0_i32_0 : i32, i32
  }
  func.func @transform_2(%arg0: i32) -> (i32, i32) {
    %c0_i32 = arith.constant 0 : i32
    %c0_i32_0 = arith.constant 0 : i32
    %c0_i32_1 = arith.constant 0 : i32
    return %c0_i32, %c0_i32_0 : i32, i32
  }
  func.func @transform_3(%arg0: i32) -> (i32, i32) {
    %c0_i32 = arith.constant 0 : i32
    %c0_i32_0 = arith.constant 0 : i32
    return %arg0, %c0_i32 : i32, i32
  }
}

</mosaic_0001>

<llo_original>
// kernel: flatten_head_forward.1
$region0: #{flatten_head_forward.1}
  #allocation0 [shape = 'u32[]', space=smem, size = 0x4, offset = 0x4, fixed_abs, tag = 'smem constant byte address 0x4 - core index']
  #allocation1 [shape = 'u32[144,128]{1,0:T(1,128)}', space=vmem, size = 0x12000, scoped, tag = 'internal scratch']
  %s0 = inlined_call_operand.vmem [shape: f32[8,128], index: 0, kind: input, shape index: {}]
  %s1 = inlined_call_operand.vmem [shape: f32[128,24], index: 1, kind: input, shape index: {}]
  %s2 = inlined_call_operand.vmem [shape: f32[1,24], index: 2, kind: input, shape index: {}]
  %s3 = inlined_call_operand.hbm [shape: f32[8,24], index: 3, kind: output, shape index: {}]
  %s4 = sld [smem:[#allocation0]]
  $region22: #{flatten_head_forward.1} parent=0
    _
  %s6 = ssub.s32 1, %s4
  %s7 = scalar_select 0, %s6, %s4
  $region1: #{flatten_head_forward.1} parent=0
    #allocation2 [shape = 'u8[4096]{0}', space=vmem, size = 0x1000, scoped, tag = 'output window, operand 0, single buffered']
    #allocation3 [shape = 's32[1]{0}', space=sflag, size = 0x4, scoped, tag = 'scoped memory for flatten_head_forward.1']
    %8 = vsyncpa [#allocation3], 0
    // Predicated region
    $region2: #{flatten_head_forward.1} parent=1 // pred_check
      _
    $region3: #{flatten_head_forward.1} parent=1 // pred_check_branch
      %10 = sbr.rel (0) target = $region5
    $region4: #{flatten_head_forward.1} parent=1 // pred_region
      _
    $region5: #{flatten_head_forward.1} parent=1 // pred_fallthru
      _
    // Predicated region
    $region6: #{flatten_head_forward.1} parent=1 // pred_check
      _
    $region7: #{flatten_head_forward.1} parent=1 // pred_check_branch
      %12 = sbr.rel (0) target = $region9
    $region8: #{flatten_head_forward.1} parent=1 // pred_region
      _
    $region9: #{flatten_head_forward.1} parent=1 // pred_fallthru
      _
    // Predicated region
    $region10: #{flatten_head_forward.1} parent=1 // pred_check
      _
    $region11: #{flatten_head_forward.1} parent=1 // pred_check_branch
      %14 = sbr.rel (0) target = $region13
    $region12: #{flatten_head_forward.1} parent=1 // pred_region
      _
    $region13: #{flatten_head_forward.1} parent=1 // pred_fallthru
      _
    %v15 = vld [vmem:[%s0] sm:$0xff]
    %v16 = vld [vmem:[%s1] sm:$0xff]
    %v17 = vld [vmem:[%s1 + $0x8] sm:$0xff]
    %v18 = vld [vmem:[%s1 + $0x10] sm:$0xff]
    %v19 = vld [vmem:[%s1 + $0x18] sm:$0xff]
    %v20 = vld [vmem:[%s1 + $0x20] sm:$0xff]
    %v21 = vld [vmem:[%s1 + $0x28] sm:$0xff]
    %v22 = vld [vmem:[%s1 + $0x30] sm:$0xff]
    %v23 = vld [vmem:[%s1 + $0x38] sm:$0xff]
    %v24 = vld [vmem:[%s1 + $0x40] sm:$0xff]
    %v25 = vld [vmem:[%s1 + $0x48] sm:$0xff]
    %v26 = vld [vmem:[%s1 + $0x50] sm:$0xff]
    %v27 = vld [vmem:[%s1 + $0x58] sm:$0xff]
    %v28 = vld [vmem:[%s1 + $0x60] sm:$0xff]
    %v29 = vld [vmem:[%s1 + $0x68] sm:$0xff]
    %v30 = vld [vmem:[%s1 + $0x70] sm:$0xff]
    %v31 = vld [vmem:[%s1 + $0x78] sm:$0xff]
    %v32 = vld [vmem:[%s2] sm:$0x1]
    %v34 = vlaneseq
    %v35 = vshrl.u32 %v34, 7
    %v36 = vsub.s32 0, %v35
    %v37 = vrot.slane %v32, %v36
    %39 = vmatprep.subr.mxu0 0.0
    %40 = vmatpush1.msra.mxu0 %v16
    %41 = vmatprep.subr.mxu0 0.0
    %42 = vmatpush1.msra.mxu0 %v17
    %43 = vmatprep.subr.mxu0 0.0
    %44 = vmatpush1.msra.mxu0 %v18
    %45 = vmatprep.subr.mxu0 0.0
    %46 = vmatpush1.msra.mxu0 %v19
    %47 = vmatprep.subr.mxu0 0.0
    %48 = vmatpush1.msra.mxu0 %v20
    %49 = vmatprep.subr.mxu0 0.0
    %50 = vmatpush1.msra.mxu0 %v21
    %51 = vmatprep.subr.mxu0 0.0
    %52 = vmatpush1.msra.mxu0 %v22
    %53 = vmatprep.subr.mxu0 0.0
    %54 = vmatpush1.msra.mxu0 %v23
    %55 = vmatprep.subr.mxu0 0.0
    %56 = vmatpush1.msra.mxu0 %v24
    %57 = vmatprep.subr.mxu0 0.0
    %58 = vmatpush1.msra.mxu0 %v25
    %59 = vmatprep.subr.mxu0 0.0
    %60 = vmatpush1.msra.mxu0 %v26
    %61 = vmatprep.subr.mxu0 0.0
    %62 = vmatpush1.msra.mxu0 %v27
    %63 = vmatprep.subr.mxu0 0.0
    %64 = vmatpush1.msra.mxu0 %v28
    %65 = vmatprep.subr.mxu0 0.0
    %66 = vmatpush1.msra.mxu0 %v29
    %67 = vmatprep.subr.mxu0 0.0
    %68 = vmatpush1.msra.mxu0 %v30
    %69 = vmatprep.subr.mxu0 0.0
    %70 = vmatpush1.msra.mxu0 %v31
    %71 = vmatprep.subr.mxu0 0.0
    %72 = vmatpush1.msra.mxu0 0.0
    %73 = vmatprep.subr.mxu0 0.0
    %74 = vmatpush1.msra.mxu0 0.0
    %75 = vmatprep.subr.mxu0 0.0
    %76 = vmatpush1.msra.mxu0 0.0
    %77 = vmatprep.subr.mxu0 0.0
    %78 = vmatpush1.msra.mxu0 0.0
    %79 = vmatprep.subr.mxu0 0.0
    %80 = vmatpush1.msra.mxu0 0.0
    %81 = vmatprep.subr.mxu0 0.0
    %82 = vmatpush1.msra.mxu0 0.0
    %83 = vmatprep.subr.mxu0 0.0
    %84 = vmatpush1.msra.mxu0 0.0
    %85 = vmatprep.subr.mxu0 0.0
    %86 = vmatpush1.msra.mxu0 0.0
    %87 = vmatprep.subr.mxu0 0.0
    %88 = vmatpush1.msra.mxu0 0.0
    %89 = vmatprep.subr.mxu0 0.0
    %90 = vmatpush1.msra.mxu0 0.0
    %91 = vmatprep.subr.mxu0 0.0
    %92 = vmatpush1.msra.mxu0 0.0
    %93 = vmatprep.subr.mxu0 0.0
    %94 = vmatpush1.msra.mxu0 0.0
    %95 = vmatprep.subr.mxu0 0.0
    %96 = vmatpush1.msra.mxu0 0.0
    %97 = vmatprep.subr.mxu0 0.0
    %98 = vmatpush1.msra.mxu0 0.0
    %99 = vmatprep.subr.mxu0 0.0
    %100 = vmatpush1.msra.mxu0 0.0
    %101 = vmatprep.subr.mxu0 0.0
    %102 = vmatpush1.msra.mxu0 0.0
    %103 = vmatprep.mubr.f32.mxu0 0.0
    %104 = vmatmul.mubr.f32.gmra.mrb[0].mxu0 %v15
    %v105 = vpop.f32.mrb[0].mxu0
    %v106 = vadd.f32 %v37, %v105
    %v107 = vpop.f32.mrb[0].mxu0
    %108 = vdwg.mxu0
    %vm109 = vcmask 195584
    %110 = vst.msk [vmem:[#allocation2] sm:$0xff] %vm109, %v106
    // Predicated region
    $region14: #{flatten_head_forward.1} parent=1 // pred_check
      _
    $region15: #{flatten_head_forward.1} parent=1 // pred_check_branch
      %112 = sbr.rel (0) target = $region17
    $region16: #{flatten_head_forward.1} parent=1 // pred_region
      %s114 = ssub.s32 128, 128
      %115 = vsyncadd [#allocation3], %s114
      %s117 = sshll.u32 [#allocation2], 4
      %s118 = int_to_ptr.vmem [resolvable:$true] %s117
      %120 = dma.vmem_to_hbm [thread:$0]  %s118, 128, %s3, [#allocation3]
    $region17: #{flatten_head_forward.1} parent=1 // pred_fallthru
      _
    // Predicated region
    $region18: #{flatten_head_forward.1} parent=1 // pred_check
      _
    $region19: #{flatten_head_forward.1} parent=1 // pred_check_branch
      %122 = sbr.rel (0) target = $region21
    $region20: #{flatten_head_forward.1} parent=1 // pred_region
      %123 = dma.done [#allocation3], 128
    $region21: #{flatten_head_forward.1} parent=1 // pred_fallthru
      _
    %124 = vsyncpa [#allocation3], 1

</llo_original>
